<compile_context>
chip_gen: v5e
topology: v5e:2x2
jax: 0.10.0
libtpu: 0.0.40
codegen_flags: <defaults>
</compile_context>

<pallas_src>
import numpy as np
import jax
import jax.numpy as jnp
from jax.experimental import pallas as pl
from jax.experimental.pallas import tpu as pltpu


def _il_fusion_kernel(img_ref, pt_ref, wi_ref, wp_ref, b_ref, relu_ref, pre_ref):
    # img_ref : [1, C_I, P]   pt_ref : [1, C_P, P]   (positions on lanes)
    # wi_ref  : [C_out, C_I]  wp_ref : [C_out, C_P]  b_ref : [C_out, 1]
    x_img = img_ref[0]                                        # [C_I, P]
    x_pt = pt_ref[0]                                          # [C_P, P]
    y = jnp.dot(wi_ref[...], x_img, preferred_element_type=jnp.float32)
    y = y + jnp.dot(wp_ref[...], x_pt, preferred_element_type=jnp.float32)
    y = y + b_ref[...]                                        # lane-broadcast bias
    pre_ref[0] = y.astype(pre_ref.dtype)                      # bn(conv(cat))
    relu_ref[0] = jnp.maximum(y, 0.0).astype(relu_ref.dtype)  # relu(bn(conv(cat)))


def _round_up(x, m):
    return ((x + m - 1) // m) * m


def il_fusion(point_features, img_features, conv_w, conv_b,
              bn_gamma, bn_beta, bn_mean, bn_var, eps=1e-5, tile_p=2048):
    """ILFusion forward.

    point_features: [B, C_P, N], img_features: [B, C_I, N]   (channel-first)
    conv_w: [C_out, C_I + C_P]  (1x1 conv, input channel order = [img, point])
    Returns (relu(bn(conv(cat))), bn(conv(cat))), both [B, C_out, N].
    """
    B, C_P, N = point_features.shape
    _, C_I, _ = img_features.shape
    C_out = conv_w.shape[0]

    # ---- fold inference-mode BatchNorm into the 1x1 conv (f32, weights tiny) ----
    scale = bn_gamma / jnp.sqrt(bn_var + eps)                 # [C_out]
    w_eff = conv_w.astype(jnp.float32) * scale[:, None]       # [C_out, C_I + C_P]
    b_eff = (conv_b - bn_mean) * scale + bn_beta              # [C_out]
    w_img = w_eff[:, :C_I]                                    # cat order: img first
    w_pt = w_eff[:, C_I:]
    b_col = b_eff[:, None].astype(jnp.float32)                # [C_out, 1]

    # outputs keep the producer dtype (no forced f32 I/O; accumulation stays f32)
    out_dtype = jnp.result_type(point_features.dtype, img_features.dtype)

    # ---- lane-tile selection: multiple of 128, no bigger than needed ----
    tile_p = max(128, min(int(tile_p), _round_up(N, 128)))
    if B == 1:
        # keep >= 2 parallel grid steps so both v7x TensorCores get work
        tile_p = min(tile_p, max(128, _round_up(pl.cdiv(N, 2), 128)))
    tile_p = _round_up(tile_p, 128)
    num_tiles = pl.cdiv(N, tile_p)                            # ragged last block OK

    # ---- modest VMEM cap derived from the actual block footprint ----
    in_bytes = max(np.dtype(img_features.dtype).itemsize,
                   np.dtype(point_features.dtype).itemsize)
    out_bytes = np.dtype(out_dtype).itemsize
    block_bytes = (C_I + C_P) * tile_p * in_bytes + 2 * C_out * tile_p * out_bytes
    weight_bytes = (C_out * (C_I + C_P) + C_out) * 4
    vmem_limit = int(min(32 * 1024 * 1024,
                         max(8 * 1024 * 1024, 3 * block_bytes + 4 * weight_bytes)))

    relu_o, pre_o = pl.pallas_call(
        _il_fusion_kernel,
        out_shape=(jax.ShapeDtypeStruct((B, C_out, N), out_dtype),
                   jax.ShapeDtypeStruct((B, C_out, N), out_dtype)),
        grid_spec=pltpu.PrefetchScalarGridSpec(
            num_scalar_prefetch=0,
            grid=(B, num_tiles),
            in_specs=[
                pl.BlockSpec((1, C_I, tile_p), lambda b, t: (b, 0, t)),   # img tile
                pl.BlockSpec((1, C_P, tile_p), lambda b, t: (b, 0, t)),   # point tile
                pl.BlockSpec((C_out, C_I), lambda b, t: (0, 0)),          # W_img
                pl.BlockSpec((C_out, C_P), lambda b, t: (0, 0)),          # W_point
                pl.BlockSpec((C_out, 1), lambda b, t: (0, 0)),            # folded bias
            ],
            out_specs=(
                pl.BlockSpec((1, C_out, tile_p), lambda b, t: (b, 0, t)),
                pl.BlockSpec((1, C_out, tile_p), lambda b, t: (b, 0, t)),
            ),
        ),
        compiler_params=pltpu.CompilerParams(
            dimension_semantics=("parallel", "parallel"),
            vmem_limit_bytes=vmem_limit),
    )(img_features, point_features, w_img, w_pt, b_col)

    return relu_o, pre_o


def reference(point_features, img_features, conv_w, conv_b,
              bn_gamma, bn_beta, bn_mean, bn_var, eps=1e-5):
    """Pure-JAX reference mirroring the PyTorch forward (inference-mode BN)."""
    cat = jnp.concatenate([img_features, point_features], axis=1)      # [B, C_in, N]
    y = jnp.einsum('oi,bin->bon', conv_w, cat.astype(jnp.float32)) \
        + conv_b[None, :, None]
    inv = 1.0 / jnp.sqrt(bn_var + eps)
    bn = (y - bn_mean[None, :, None]) * (bn_gamma * inv)[None, :, None] \
         + bn_beta[None, :, None]
    return jnp.maximum(bn, 0.0), bn


if __name__ == "__main__":
    # Small shapes; N deliberately NOT a multiple of the tile so the ragged
    # (partial) last block path is exercised (no wrapper pad / slice).
    B, C_I, C_P, C_out, N = 2, 32, 32, 64, 384
    TILE_P = 256

    key = jax.random.PRNGKey(0)
    ks = jax.random.split(key, 8)
    point_features = jax.random.normal(ks[0], (B, C_P, N), dtype=jnp.float32)
    img_features = jax.random.normal(ks[1], (B, C_I, N), dtype=jnp.float32)

    # 1x1-conv parameters (weight stored as [C_out, C_in]) + BatchNorm params
    conv_w = jax.random.normal(ks[2], (C_out, C_I + C_P), dtype=jnp.float32) \
        / np.sqrt(C_I + C_P)
    conv_b = 0.1 * jax.random.normal(ks[3], (C_out,), dtype=jnp.float32)
    bn_gamma = 1.0 + 0.1 * jax.random.normal(ks[4], (C_out,), dtype=jnp.float32)
    bn_beta = 0.1 * jax.random.normal(ks[5], (C_out,), dtype=jnp.float32)
    bn_mean = 0.1 * jax.random.normal(ks[6], (C_out,), dtype=jnp.float32)
    bn_var = jnp.abs(1.0 + 0.1 * jax.random.normal(ks[7], (C_out,), dtype=jnp.float32))

    relu_out, pre_out = il_fusion(point_features, img_features, conv_w, conv_b,
                                  bn_gamma, bn_beta, bn_mean, bn_var,
                                  tile_p=TILE_P)
    relu_out = jax.block_until_ready(relu_out)
    pre_out = jax.block_until_ready(pre_out)

    ref_relu, ref_pre = reference(point_features, img_features, conv_w, conv_b,
                                  bn_gamma, bn_beta, bn_mean, bn_var)

    np.testing.assert_allclose(np.asarray(pre_out), np.asarray(ref_pre),
                               rtol=1e-3, atol=1e-3)
    np.testing.assert_allclose(np.asarray(relu_out), np.asarray(ref_relu),
                               rtol=1e-3, atol=1e-3)
    assert relu_out.shape == (B, C_out, N) and pre_out.shape == (B, C_out, N)
    print("KERNEL_OK")
</pallas_src>

<mosaic_0001>
module attributes {stable_mosaic.version = 11 : i64} {
  func.func @_il_fusion_kernel(%arg0: i32, %arg1: i32, %arg2: memref<1x32x256xf32, #tpu.memory_space<vmem>>, %arg3: memref<1x32x256xf32, #tpu.memory_space<vmem>>, %arg4: memref<64x32xf32, #tpu.memory_space<vmem>>, %arg5: memref<64x32xf32, #tpu.memory_space<vmem>>, %arg6: memref<64x1xf32, #tpu.memory_space<vmem>>, %arg7: memref<1x64x256xf32, #tpu.memory_space<vmem>>, %arg8: memref<1x64x256xf32, #tpu.memory_space<vmem>>) attributes {dimension_semantics = [#tpu.dimension_semantics<parallel>, #tpu.dimension_semantics<parallel>], iteration_bounds = array<i64: 2, 2>, scalar_prefetch = 0 : i64, scratch_operands = 0 : i64, tpu.core_type = #tpu.core_type<tc>, window_params = [{transform_indices = @transform_0, window_bounds = array<i64: 1, 32, 256>}, {transform_indices = @transform_1, window_bounds = array<i64: 1, 32, 256>}, {pipeline_mode = #tpu.pipeline_mode<synchronous>, transform_indices = @transform_2, window_bounds = array<i64: 64, 32>}, {pipeline_mode = #tpu.pipeline_mode<synchronous>, transform_indices = @transform_3, window_bounds = array<i64: 64, 32>}, {pipeline_mode = #tpu.pipeline_mode<synchronous>, transform_indices = @transform_4, window_bounds = array<i64: 64, 1>}, {transform_indices = @transform_5, window_bounds = array<i64: 1, 64, 256>}, {transform_indices = @transform_6, window_bounds = array<i64: 1, 64, 256>}]} {
    %c0 = arith.constant 0 : index
    %c0_0 = arith.constant 0 : index
    %c0_1 = arith.constant 0 : index
    %0 = vector.load %arg2[%c0, %c0_0, %c0_1] : memref<1x32x256xf32, #tpu.memory_space<vmem>>, vector<1x32x256xf32>
    %1 = vector.shape_cast %0 : vector<1x32x256xf32> to vector<32x256xf32>
    %c0_2 = arith.constant 0 : index
    %c0_3 = arith.constant 0 : index
    %c0_4 = arith.constant 0 : index
    %2 = vector.load %arg3[%c0_2, %c0_3, %c0_4] : memref<1x32x256xf32, #tpu.memory_space<vmem>>, vector<1x32x256xf32>
    %3 = vector.shape_cast %2 : vector<1x32x256xf32> to vector<32x256xf32>
    %c0_5 = arith.constant 0 : index
    %c0_6 = arith.constant 0 : index
    %4 = vector.load %arg4[%c0_5, %c0_6] : memref<64x32xf32, #tpu.memory_space<vmem>>, vector<64x32xf32>
    %cst = arith.constant dense<0.000000e+00> : vector<64x256xf32>
    %5 = tpu.matmul %4, %1, %cst {dimension_numbers = #tpu.dot_dimension_numbers<[1], [0], [0], [1], [0, 0, 1, 1], [], []>} : vector<64x32xf32>, vector<32x256xf32>, vector<64x256xf32> -> vector<64x256xf32>
    %c0_7 = arith.constant 0 : index
    %c0_8 = arith.constant 0 : index
    %6 = vector.load %arg5[%c0_7, %c0_8] : memref<64x32xf32, #tpu.memory_space<vmem>>, vector<64x32xf32>
    %cst_9 = arith.constant dense<0.000000e+00> : vector<64x256xf32>
    %7 = tpu.matmul %6, %3, %cst_9 {dimension_numbers = #tpu.dot_dimension_numbers<[1], [0], [0], [1], [0, 0, 1, 1], [], []>} : vector<64x32xf32>, vector<32x256xf32>, vector<64x256xf32> -> vector<64x256xf32>
    %8 = arith.addf %5, %7 : vector<64x256xf32>
    %c0_10 = arith.constant 0 : index
    %c0_11 = arith.constant 0 : index
    %9 = vector.load %arg6[%c0_10, %c0_11] : memref<64x1xf32, #tpu.memory_space<vmem>>, vector<64x1xf32>
    %10 = vector.broadcast %9 : vector<64x1xf32> to vector<64x256xf32>
    %11 = arith.addf %8, %10 : vector<64x256xf32>
    %c0_12 = arith.constant 0 : index
    %c0_13 = arith.constant 0 : index
    %c0_14 = arith.constant 0 : index
    %12 = vector.load %arg8[%c0_12, %c0_13, %c0_14] : memref<1x64x256xf32, #tpu.memory_space<vmem>>, vector<1x64x256xf32>
    %13 = vector.shape_cast %12 : vector<1x64x256xf32> to vector<64x256xf32>
    %14 = vector.shape_cast %11 : vector<64x256xf32> to vector<1x64x256xf32>
    tpu.vector_store %arg8[%c0_12, %c0_13, %c0_14], %14 {strides = array<i32>} : memref<1x64x256xf32, #tpu.memory_space<vmem>>, vector<1x64x256xf32>,
    %cst_15 = arith.constant 0.000000e+00 : f32
    %15 = vector.broadcast %cst_15 : f32 to vector<64x256xf32>
    %16 = arith.maximumf %11, %15 : vector<64x256xf32>
    %c0_16 = arith.constant 0 : index
    %c0_17 = arith.constant 0 : index
    %c0_18 = arith.constant 0 : index
    %17 = vector.load %arg7[%c0_16, %c0_17, %c0_18] : memref<1x64x256xf32, #tpu.memory_space<vmem>>, vector<1x64x256xf32>
    %18 = vector.shape_cast %17 : vector<1x64x256xf32> to vector<64x256xf32>
    %19 = vector.shape_cast %16 : vector<64x256xf32> to vector<1x64x256xf32>
    tpu.vector_store %arg7[%c0_16, %c0_17, %c0_18], %19 {strides = array<i32>} : memref<1x64x256xf32, #tpu.memory_space<vmem>>, vector<1x64x256xf32>,
    return
  }
  func.func @transform_0(%arg0: i32, %arg1: i32) -> (i32, i32, i32) {
    %c0_i32 = arith.constant 0 : i32
    %c0_i32_0 = arith.constant 0 : i32
    return %arg0, %c0_i32, %arg1 : i32, i32, i32
  }
  func.func @transform_1(%arg0: i32, %arg1: i32) -> (i32, i32, i32) {
    %c0_i32 = arith.constant 0 : i32
    %c0_i32_0 = arith.constant 0 : i32
    return %arg0, %c0_i32, %arg1 : i32, i32, i32
  }
  func.func @transform_2(%arg0: i32, %arg1: i32) -> (i32, i32) {
    %c0_i32 = arith.constant 0 : i32
    %c0_i32_0 = arith.constant 0 : i32
    %c0_i32_1 = arith.constant 0 : i32
    return %c0_i32, %c0_i32_0 : i32, i32
  }
  func.func @transform_3(%arg0: i32, %arg1: i32) -> (i32, i32) {
    %c0_i32 = arith.constant 0 : i32
    %c0_i32_0 = arith.constant 0 : i32
    %c0_i32_1 = arith.constant 0 : i32
    return %c0_i32, %c0_i32_0 : i32, i32
  }
  func.func @transform_4(%arg0: i32, %arg1: i32) -> (i32, i32) {
    %c0_i32 = arith.constant 0 : i32
    %c0_i32_0 = arith.constant 0 : i32
    %c0_i32_1 = arith.constant 0 : i32
    return %c0_i32, %c0_i32_0 : i32, i32
  }
  func.func @transform_5(%arg0: i32, %arg1: i32) -> (i32, i32, i32) {
    %c0_i32 = arith.constant 0 : i32
    %c0_i32_0 = arith.constant 0 : i32
    return %arg0, %c0_i32, %arg1 : i32, i32, i32
  }
  func.func @transform_6(%arg0: i32, %arg1: i32) -> (i32, i32, i32) {
    %c0_i32 = arith.constant 0 : i32
    %c0_i32_0 = arith.constant 0 : i32
    return %arg0, %c0_i32, %arg1 : i32, i32, i32
  }
}

</mosaic_0001>

<llo_original>
// kernel: tpu_custom_call.1
$region0: #{tpu_custom_call.1}
  #allocation0 [shape = 'u32[]', space=smem, size = 0x4, offset = 0x4, fixed_abs, tag = 'smem constant byte address 0x4 - core index']
  #allocation1 [shape = 'u32[72,128]{1,0:T(1,128)}', space=vmem, size = 0x9000, scoped, tag = 'internal scratch']
  %s0 = inlined_call_operand.hbm [shape: f32[2,32,384], index: 0, kind: input, shape index: {}]
  %s1 = inlined_call_operand.hbm [shape: f32[2,32,384], index: 1, kind: input, shape index: {}]
  %s2 = inlined_call_operand.vmem [shape: f32[64,32], index: 2, kind: input, shape index: {}]
  %s3 = inlined_call_operand.vmem [shape: f32[64,32], index: 3, kind: input, shape index: {}]
  %s4 = inlined_call_operand.vmem [shape: f32[64,1], index: 4, kind: input, shape index: {}]
  %s5 = inlined_call_operand.hbm [shape: f32[2,64,384], index: 5, kind: output, shape index: {0}]
  %s6 = inlined_call_operand.hbm [shape: f32[2,64,384], index: 6, kind: output, shape index: {1}]
  %7 = xla_tuple %s5, %s6
  %s8 = sld [smem:[#allocation0]]
  $region69: #{tpu_custom_call.1} parent=0
    _
  %s10 = ssub.s32 1, %s8
  %s11 = scalar_select 0, %s10, %s8
  $region1: #{tpu_custom_call.1} parent=0
    #allocation2 [shape = 'u8[65536]{0}', space=vmem, size = 0x10000, scoped, tag = 'input window, operand 0']
    #allocation3 [shape = 's32[2]{0}', space=sflag, size = 0x8, scoped, tag = 'scoped memory for tpu_custom_call.1']
    #allocation4 [shape = 's32[2]{0}', space=sflag, size = 0x8, scoped, tag = 'scoped memory for tpu_custom_call.1']
    #allocation5 [shape = 'u8[65536]{0}', space=vmem, size = 0x10000, scoped, tag = 'input window, operand 1']
    #allocation6 [shape = 's32[2]{0}', space=sflag, size = 0x8, scoped, tag = 'scoped memory for tpu_custom_call.1']
    #allocation7 [shape = 'u8[131072]{0}', space=vmem, size = 0x20000, scoped, tag = 'output window, operand 0']
    #allocation8 [shape = 'u8[131072]{0}', space=vmem, size = 0x20000, scoped, tag = 'output window, operand 1']
    #allocation9 [shape = 's32[2]{0}', space=sflag, size = 0x8, scoped, tag = 'scoped memory for tpu_custom_call.1']
    %12 = vsyncpa [#allocation3], 0
    %s13 = scalar_lea.sflag [#allocation3], 1
    %14 = vsyncpa %s13, 0
    %15 = vsyncpa [#allocation6], 0
    %s16 = scalar_lea.sflag [#allocation6], 1
    %17 = vsyncpa %s16, 0
    %18 = vsyncpa [#allocation4], 0
    %s19 = scalar_lea.sflag [#allocation4], 1
    %20 = vsyncpa %s19, 0
    %21 = vsyncpa [#allocation9], 0
    %s22 = scalar_lea.sflag [#allocation9], 1
    %23 = vsyncpa %s22, 0
    loop: start=0, step=1, limit=6
    $region2: #{tpu_custom_call.1} parent=1 // loop_pre_header
      _
    $region3: #{tpu_custom_call.1} parent=1 // loop_header
      %s25 = sphi 0, %s29
      %p26 = scmp.ge.s32.totalorder %s25, 6
      %s32 = sphi 0, %s44
      %s33 = sphi 0, %s40
      %s34 = sphi 0, %s32
      %s35 = sphi 0, %s33
      %s36 = sphi 0, %s34
      %s37 = sphi 0, %s35
      %s49 = sphi 0, %s51
      %s52 = sphi 0, %s49
      %s53 = sphi 0, %s52
      %s69 = sphi 0, %s53
      %s77 = sphi 0, %s79
      %s80 = sphi 0, %s77
      %s81 = sphi 0, %s80
      %s97 = sphi 0, %s81
      %s101 = sphi 0, %s101
      %s103 = sphi 0, %s101
      %s104 = sphi 0, %s103
      %s118 = sphi 0, %s104
      %s122 = sphi 0, %s122
      %s124 = sphi 0, %s122
      %s125 = sphi 0, %s124
      %s139 = sphi 0, %s125
      %s143 = sphi 0, %s143
      %s145 = sphi 0, %s143
      %s146 = sphi 0, %s145
      %s160 = sphi 0, %s146
      %s168 = sphi 0, %s170
      %s171 = sphi 0, %s168
      %s172 = sphi 0, %s171
      %s188 = sphi 0, %s172
      %s196 = sphi 0, %s198
      %s199 = sphi 0, %s196
      %s200 = sphi 0, %s199
      %s216 = sphi 0, %s200
    $region4: #{tpu_custom_call.1} parent=1 // loop_header_branch
      %28 = sbr.rel (%p26) target = $region8
    $region5: #{tpu_custom_call.1} parent=1 // loop_body
      %s30 = ssub.s32 %s25, 1
      %s31 = ssub.s32 %s25, 2
      %s38 = sadd.s32 1, %s33
      %p39 = scmp.ge.s32.totalorder %s38, 2
      %s40 = scalar_select %p39, 0, %s38
      %s41 = sadd.s32 1, %s32
      %s42 = scalar_select %p39, %s41, %s32
      %p43 = scmp.ge.s32.totalorder %s42, 2
      %s44 = scalar_select %p43, 0, %s42
      %s45 = ssub.s32 %s32, %s44
      %s46 = ssub.s32 %s33, %s40
      %s47 = sor.u32 %s45, %s46
      %p48 = scmp.eq.s32.totalorder %s47, 0
      %s50 = sadd.s32 %s49, 1
      %s51 = scalar_select %p48, %s49, %s50
      %p54 = pneg %p48
      %p55 = scmp.eq.s32.totalorder %s25, 3
      %p56 = por %p54, %p55
      %p57 = scmp.ne.s32.totalorder %s49, %s52
      %p58 = scmp.eq.s32.totalorder %s25, 0
      %p59 = por %p57, %p58
      %p60 = scmp.ne.s32.totalorder %s49, %s52
      %p61 = scmp.eq.s32.totalorder %s30, 3
      %p62 = por %p60, %p61
      %p63 = scmp.ne.s32.totalorder %s52, %s53
      %p64 = scmp.eq.s32.totalorder %s30, 0
      %p65 = por %p63, %p64
      %p66 = scmp.ne.s32.totalorder %s52, %s53
      %p67 = scmp.eq.s32.totalorder %s31, 3
      %p68 = por %p66, %p67
      %p70 = scmp.ne.s32.totalorder %s53, %s69
      %p71 = scmp.eq.s32.totalorder %s31, 0
      %p72 = por %p70, %p71
      %s73 = ssub.s32 %s32, %s44
      %s74 = ssub.s32 %s33, %s40
      %s75 = sor.u32 %s73, %s74
      %p76 = scmp.eq.s32.totalorder %s75, 0
      %s78 = sadd.s32 %s77, 1
      %s79 = scalar_select %p76, %s77, %s78
      %p82 = pneg %p76
      %p83 = scmp.eq.s32.totalorder %s25, 3
      %p84 = por %p82, %p83
      %p85 = scmp.ne.s32.totalorder %s77, %s80
      %p86 = scmp.eq.s32.totalorder %s25, 0
      %p87 = por %p85, %p86
      %p88 = scmp.ne.s32.totalorder %s77, %s80
      %p89 = scmp.eq.s32.totalorder %s30, 3
      %p90 = por %p88, %p89
      %p91 = scmp.ne.s32.totalorder %s80, %s81
      %p92 = scmp.eq.s32.totalorder %s30, 0
      %p93 = por %p91, %p92
      %p94 = scmp.ne.s32.totalorder %s80, %s81
      %p95 = scmp.eq.s32.totalorder %s31, 3
      %p96 = por %p94, %p95
      %p98 = scmp.ne.s32.totalorder %s81, %s97
      %p99 = scmp.eq.s32.totalorder %s31, 0
      %p100 = por %p98, %p99
      %s102 = sadd.s32 %s101, 1
      %p105 = scmp.eq.s32.totalorder %s25, 3
      %p106 = scmp.ne.s32.totalorder %s101, %s103
      %p107 = scmp.eq.s32.totalorder %s25, 0
      %p108 = por %p106, %p107
      %p109 = scmp.ne.s32.totalorder %s101, %s103
      %p110 = scmp.eq.s32.totalorder %s30, 3
      %p111 = por %p109, %p110
      %p112 = scmp.ne.s32.totalorder %s103, %s104
      %p113 = scmp.eq.s32.totalorder %s30, 0
      %p114 = por %p112, %p113
      %p115 = scmp.ne.s32.totalorder %s103, %s104
      %p116 = scmp.eq.s32.totalorder %s31, 3
      %p117 = por %p115, %p116
      %p119 = scmp.ne.s32.totalorder %s104, %s118
      %p120 = scmp.eq.s32.totalorder %s31, 0
      %p121 = por %p119, %p120
      %s123 = sadd.s32 %s122, 1
      %p126 = scmp.eq.s32.totalorder %s25, 3
      %p127 = scmp.ne.s32.totalorder %s122, %s124
      %p128 = scmp.eq.s32.totalorder %s25, 0
      %p129 = por %p127, %p128
      %p130 = scmp.ne.s32.totalorder %s122, %s124
      %p131 = scmp.eq.s32.totalorder %s30, 3
      %p132 = por %p130, %p131
      %p133 = scmp.ne.s32.totalorder %s124, %s125
      %p134 = scmp.eq.s32.totalorder %s30, 0
      %p135 = por %p133, %p134
      %p136 = scmp.ne.s32.totalorder %s124, %s125
      %p137 = scmp.eq.s32.totalorder %s31, 3
      %p138 = por %p136, %p137
      %p140 = scmp.ne.s32.totalorder %s125, %s139
      %p141 = scmp.eq.s32.totalorder %s31, 0
      %p142 = por %p140, %p141
      %s144 = sadd.s32 %s143, 1
      %p147 = scmp.eq.s32.totalorder %s25, 3
      %p148 = scmp.ne.s32.totalorder %s143, %s145
      %p149 = scmp.eq.s32.totalorder %s25, 0
      %p150 = por %p148, %p149
      %p151 = scmp.ne.s32.totalorder %s143, %s145
      %p152 = scmp.eq.s32.totalorder %s30, 3
      %p153 = por %p151, %p152
      %p154 = scmp.ne.s32.totalorder %s145, %s146
      %p155 = scmp.eq.s32.totalorder %s30, 0
      %p156 = por %p154, %p155
      %p157 = scmp.ne.s32.totalorder %s145, %s146
      %p158 = scmp.eq.s32.totalorder %s31, 3
      %p159 = por %p157, %p158
      %p161 = scmp.ne.s32.totalorder %s146, %s160
      %p162 = scmp.eq.s32.totalorder %s31, 0
      %p163 = por %p161, %p162
      %s164 = ssub.s32 %s32, %s44
      %s165 = ssub.s32 %s33, %s40
      %s166 = sor.u32 %s164, %s165
      %p167 = scmp.eq.s32.totalorder %s166, 0
      %s169 = sadd.s32 %s168, 1
      %s170 = scalar_select %p167, %s168, %s169
      %p173 = pneg %p167
      %p174 = scmp.eq.s32.totalorder %s25, 3
      %p175 = por %p173, %p174
      %p176 = scmp.ne.s32.totalorder %s168, %s171
      %p177 = scmp.eq.s32.totalorder %s25, 0
      %p178 = por %p176, %p177
      %p179 = scmp.ne.s32.totalorder %s168, %s171
      %p180 = scmp.eq.s32.totalorder %s30, 3
      %p181 = por %p179, %p180
      %p182 = scmp.ne.s32.totalorder %s171, %s172
      %p183 = scmp.eq.s32.totalorder %s30, 0
      %p184 = por %p182, %p183
      %p185 = scmp.ne.s32.totalorder %s171, %s172
      %p186 = scmp.eq.s32.totalorder %s31, 3
      %p187 = por %p185, %p186
      %p189 = scmp.ne.s32.totalorder %s172, %s188
      %p190 = scmp.eq.s32.totalorder %s31, 0
      %p191 = por %p189, %p190
      %s192 = ssub.s32 %s32, %s44
      %s193 = ssub.s32 %s33, %s40
      %s194 = sor.u32 %s192, %s193
      %p195 = scmp.eq.s32.totalorder %s194, 0
      %s197 = sadd.s32 %s196, 1
      %s198 = scalar_select %p195, %s196, %s197
      %p201 = pneg %p195
      %p202 = scmp.eq.s32.totalorder %s25, 3
      %p203 = por %p201, %p202
      %p204 = scmp.ne.s32.totalorder %s196, %s199
      %p205 = scmp.eq.s32.totalorder %s25, 0
      %p206 = por %p204, %p205
      %p207 = scmp.ne.s32.totalorder %s196, %s199
      %p208 = scmp.eq.s32.totalorder %s30, 3
      %p209 = por %p207, %p208
      %p210 = scmp.ne.s32.totalorder %s199, %s200
      %p211 = scmp.eq.s32.totalorder %s30, 0
      %p212 = por %p210, %p211
      %p213 = scmp.ne.s32.totalorder %s199, %s200
      %p214 = scmp.eq.s32.totalorder %s31, 3
      %p215 = por %p213, %p214
      %p217 = scmp.ne.s32.totalorder %s200, %s216
      %p218 = scmp.eq.s32.totalorder %s31, 0
      %p219 = por %p217, %p218
      %p220 = scmp.le.s32.totalorder 1, %s25
      %p221 = scmp.lt.s32.totalorder %s25, 5
      %p222 = pnand %p220, %p221
      %p223 = pneg %p222
      // Predicated region
      $region9: #{tpu_custom_call.1} parent=5 // pred_check
        _
      $region10: #{tpu_custom_call.1} parent=5 // pred_check_branch
        %225 = sbr.rel (%p222) target = $region12
      $region11: #{tpu_custom_call.1} parent=5 // pred_region
        %s226 = ssub.s32 %s25, 1
        // Predicated region
        $region13: #{tpu_custom_call.1} parent=11 // pred_check
          %p227 = pneg %p114
        $region14: #{tpu_custom_call.1} parent=11 // pred_check_branch
          %229 = sbr.rel (%p227) target = $region16
        $region15: #{tpu_custom_call.1} parent=11 // pred_region
          _
        $region16: #{tpu_custom_call.1} parent=11 // pred_fallthru
          _
        // Predicated region
        $region17: #{tpu_custom_call.1} parent=11 // pred_check
          %p230 = pneg %p135
        $region18: #{tpu_custom_call.1} parent=11 // pred_check_branch
          %232 = sbr.rel (%p230) target = $region20
        $region19: #{tpu_custom_call.1} parent=11 // pred_region
          _
        $region20: #{tpu_custom_call.1} parent=11 // pred_fallthru
          _
        // Predicated region
        $region21: #{tpu_custom_call.1} parent=11 // pred_check
          %p233 = pneg %p156
        $region22: #{tpu_custom_call.1} parent=11 // pred_check_branch
          %235 = sbr.rel (%p233) target = $region24
        $region23: #{tpu_custom_call.1} parent=11 // pred_region
          _
        $region24: #{tpu_custom_call.1} parent=11 // pred_fallthru
          _
      $region12: #{tpu_custom_call.1} parent=5 // pred_fallthru
        _
      %p236 = scmp.lt.s32.totalorder %s25, 4
      // Predicated region
      $region25: #{tpu_custom_call.1} parent=5 // pred_check
        %p237 = pneg %p236
      $region26: #{tpu_custom_call.1} parent=5 // pred_check_branch
        %239 = sbr.rel (%p237) target = $region28
      $region27: #{tpu_custom_call.1} parent=5 // pred_region
        // Predicated region
        $region29: #{tpu_custom_call.1} parent=27 // pred_check
          %p240 = pneg %p59
        $region30: #{tpu_custom_call.1} parent=27 // pred_check_branch
          %242 = sbr.rel (%p240) target = $region32
        $region31: #{tpu_custom_call.1} parent=27 // pred_region
          %s243 = sand.u32 %s49, 1
          %s244 = scalar_lea.sflag [#allocation3], %s243
          %s245 = sand.u32 %s49, 1
          %s246 = smul.addr %s245, 64
          %s247 = scalar_lea.vmem [#allocation2], %s246
          %s248 = smul.u32 2, %s33
          %s249 = ssub.s32 3, %s248
          %p250 = scmp.lt.s32.totalorder %s249, 2
          %s251 = scalar_select %p250, %s249, 2
          %s252 = smul.u32 32, %s251
          %s253 = ssub.s32 64, %s252
          %s254 = sshll.u32 %s253, 4
          %255 = vsyncadd %s244, %s254
          %p256 = scmp.ne.s32.totalorder 0, %s252
          %s257 = smul.addr %s32, 12
          %s258 = sadd.s32 %s248, %s257
          %s259 = smul.addr %s258, 8
          %s260 = scalar_lea.hbm %s0, %s259
          %s261 = smul.u32 %s251, 8
          %s262 = smul.u32 %s261, 4
          %s263 = sshll.u32 %s260, 4
          %s264 = int_to_ptr.hbm [resolvable:$true] %s263
          %s265 = sshll.u32 %s247, 4
          %s266 = int_to_ptr.vmem [resolvable:$true] %s265
          %s267 = sshll.u32 %s262, 4
          %271 = dma.hbm_to_vmem [thread:$0]  (%p256), %s264, %s267, %s266, %s244, 384, 256, %s261
        $region32: #{tpu_custom_call.1} parent=27 // pred_fallthru
          _
        // Predicated region
        $region33: #{tpu_custom_call.1} parent=27 // pred_check
          %p272 = pneg %p87
        $region34: #{tpu_custom_call.1} parent=27 // pred_check_branch
          %274 = sbr.rel (%p272) target = $region36
        $region35: #{tpu_custom_call.1} parent=27 // pred_region
          %s275 = sand.u32 %s77, 1
          %s276 = scalar_lea.sflag [#allocation6], %s275
          %s277 = sand.u32 %s77, 1
          %s278 = smul.addr %s277, 64
          %s279 = scalar_lea.vmem [#allocation5], %s278
          %s280 = smul.u32 2, %s33
          %s281 = ssub.s32 3, %s280
          %p282 = scmp.lt.s32.totalorder %s281, 2
          %s283 = scalar_select %p282, %s281, 2
          %s284 = smul.u32 32, %s283
          %s285 = ssub.s32 64, %s284
          %s286 = sshll.u32 %s285, 4
          %287 = vsyncadd %s276, %s286
          %p288 = scmp.ne.s32.totalorder 0, %s284
          %s289 = smul.addr %s32, 12
          %s290 = sadd.s32 %s280, %s289
          %s291 = smul.addr %s290, 8
          %s292 = scalar_lea.hbm %s1, %s291
          %s293 = smul.u32 %s283, 8
          %s294 = smul.u32 %s293, 4
          %s295 = sshll.u32 %s292, 4
          %s296 = int_to_ptr.hbm [resolvable:$true] %s295
          %s297 = sshll.u32 %s279, 4
          %s298 = int_to_ptr.vmem [resolvable:$true] %s297
          %s299 = sshll.u32 %s294, 4
          %303 = dma.hbm_to_vmem [thread:$0]  (%p288), %s296, %s299, %s298, %s276, 384, 256, %s293
        $region36: #{tpu_custom_call.1} parent=27 // pred_fallthru
          _
      $region28: #{tpu_custom_call.1} parent=5 // pred_fallthru
        _
      %p304 = scmp.le.s32.totalorder 1, %s25
      %p305 = scmp.lt.s32.totalorder %s25, 5
      %p306 = pnand %p304, %p305
      %p307 = pneg %p306
      // Predicated region
      $region37: #{tpu_custom_call.1} parent=5 // pred_check
        _
      $region38: #{tpu_custom_call.1} parent=5 // pred_check_branch
        %309 = sbr.rel (%p306) target = $region40
      $region39: #{tpu_custom_call.1} parent=5 // pred_region
        %s310 = ssub.s32 %s25, 1
        %s311 = sand.u32 %s52, 1
        %s312 = scalar_lea.sflag [#allocation3], %s311
        %s313 = sand.u32 %s52, 1
        %s314 = smul.addr %s313, 64
        %s315 = scalar_lea.vmem [#allocation2], %s314
        // Predicated region
        $region41: #{tpu_custom_call.1} parent=39 // pred_check
          %p316 = pneg %p65
        $region42: #{tpu_custom_call.1} parent=39 // pred_check_branch
          %318 = sbr.rel (%p316) target = $region44
        $region43: #{tpu_custom_call.1} parent=39 // pred_region
          %320 = dma.done %s312, 1024
        $region44: #{tpu_custom_call.1} parent=39 // pred_fallthru
          _
        %s321 = sand.u32 %s80, 1
        %s322 = scalar_lea.sflag [#allocation6], %s321
        %s323 = sand.u32 %s80, 1
        %s324 = smul.addr %s323, 64
        %s325 = scalar_lea.vmem [#allocation5], %s324
        // Predicated region
        $region45: #{tpu_custom_call.1} parent=39 // pred_check
          %p326 = pneg %p93
        $region46: #{tpu_custom_call.1} parent=39 // pred_check_branch
          %328 = sbr.rel (%p326) target = $region48
        $region47: #{tpu_custom_call.1} parent=39 // pred_region
          %330 = dma.done %s322, 1024
        $region48: #{tpu_custom_call.1} parent=39 // pred_fallthru
          _
        %s331 = sand.u32 %s52, 1
        %s332 = scalar_lea.sflag [#allocation3], %s331
        %s333 = sand.u32 %s52, 1
        %s334 = smul.addr %s333, 64
        %s335 = scalar_lea.vmem [#allocation2], %s334
        %p336 = pneg %p65
        %p337 = pneg %p62
        %s338 = sand.u32 %s80, 1
        %s339 = scalar_lea.sflag [#allocation6], %s338
        %s340 = sand.u32 %s80, 1
        %s341 = smul.addr %s340, 64
        %s342 = scalar_lea.vmem [#allocation5], %s341
        %p343 = pneg %p93
        %p344 = pneg %p90
        %p345 = pneg %p114
        %p346 = pneg %p111
        %p347 = pneg %p135
        %p348 = pneg %p132
        %p349 = pneg %p156
        %p350 = pneg %p153
        %p351 = pneg %p184
        %p352 = pneg %p181
        %s353 = sand.u32 %s171, 1
        %s354 = scalar_lea.sflag [#allocation4], %s353
        %s355 = sand.u32 %s171, 1
        %s356 = smul.addr %s355, 128
        %s357 = scalar_lea.vmem [#allocation7], %s356
        %p358 = pneg %p212
        %p359 = pneg %p209
        %s360 = sand.u32 %s199, 1
        %s361 = scalar_lea.sflag [#allocation9], %s360
        %s362 = sand.u32 %s199, 1
        %s363 = smul.addr %s362, 128
        %s364 = scalar_lea.vmem [#allocation8], %s363
        %s365 = smul.u32 2, %s35
        %s366 = ssub.s32 3, %s365
        %p367 = scmp.lt.s32.totalorder %s366, 2
        %s368 = scalar_select %p367, %s366, 2
        %s369 = smul.u32 32, %s368
        %s370 = smul.u32 2, %s35
        %s371 = ssub.s32 3, %s370
        %p372 = scmp.lt.s32.totalorder %s371, 2
        %s373 = scalar_select %p372, %s371, 2
        %s374 = smul.u32 32, %s373
        %s375 = smul.u32 2, %s35
        %s376 = ssub.s32 3, %s375
        %p377 = scmp.lt.s32.totalorder %s376, 2
        %s378 = scalar_select %p377, %s376, 2
        %s379 = smul.u32 64, %s378
        %s380 = smul.u32 2, %s35
        %s381 = ssub.s32 3, %s380
        %p382 = scmp.lt.s32.totalorder %s381, 2
        %s383 = scalar_select %p382, %s381, 2
        %s384 = smul.u32 64, %s383
        %v385 = vld [vmem:[%s315] sm:$0xff]
        %v386 = vld [vmem:[%s315 + $0x8] sm:$0xff]
        %v387 = vld [vmem:[%s315 + $0x10] sm:$0xff]
        %v388 = vld [vmem:[%s315 + $0x18] sm:$0xff]
        %v389 = vld [vmem:[%s315 + $0x20] sm:$0xff]
        %v390 = vld [vmem:[%s315 + $0x28] sm:$0xff]
        %v391 = vld [vmem:[%s315 + $0x30] sm:$0xff]
        %v392 = vld [vmem:[%s315 + $0x38] sm:$0xff]
        %v393 = vld [vmem:[%s325] sm:$0xff]
        %v394 = vld [vmem:[%s325 + $0x8] sm:$0xff]
        %v395 = vld [vmem:[%s325 + $0x10] sm:$0xff]
        %v396 = vld [vmem:[%s325 + $0x18] sm:$0xff]
        %v397 = vld [vmem:[%s325 + $0x20] sm:$0xff]
        %v398 = vld [vmem:[%s325 + $0x28] sm:$0xff]
        %v399 = vld [vmem:[%s325 + $0x30] sm:$0xff]
        %v400 = vld [vmem:[%s325 + $0x38] sm:$0xff]
        %v401 = vld [vmem:[%s2] sm:$0xff]
        %v402 = vld [vmem:[%s2 + $0x8] sm:$0xff]
        %v403 = vld [vmem:[%s2 + $0x10] sm:$0xff]
        %v404 = vld [vmem:[%s2 + $0x18] sm:$0xff]
        %v405 = vld [vmem:[%s2 + $0x20] sm:$0xff]
        %v406 = vld [vmem:[%s2 + $0x28] sm:$0xff]
        %v407 = vld [vmem:[%s2 + $0x30] sm:$0xff]
        %v408 = vld [vmem:[%s2 + $0x38] sm:$0xff]
        %v409 = vld [vmem:[%s3] sm:$0xff]
        %v410 = vld [vmem:[%s3 + $0x8] sm:$0xff]
        %v411 = vld [vmem:[%s3 + $0x10] sm:$0xff]
        %v412 = vld [vmem:[%s3 + $0x18] sm:$0xff]
        %v413 = vld [vmem:[%s3 + $0x20] sm:$0xff]
        %v414 = vld [vmem:[%s3 + $0x28] sm:$0xff]
        %v415 = vld [vmem:[%s3 + $0x30] sm:$0xff]
        %v416 = vld [vmem:[%s3 + $0x38] sm:$0xff]
        %vm417 = vcmask 261120
        %v419 = vsel %vm417, %v409, 0
        %v422 = vsel %vm417, %v410, 0
        %v425 = vsel %vm417, %v411, 0
        %v428 = vsel %vm417, %v412, 0
        %v431 = vsel %vm417, %v413, 0
        %v434 = vsel %vm417, %v414, 0
        %v437 = vsel %vm417, %v415, 0
        %v440 = vsel %vm417, %v416, 0
        %442 = vmatpush.msra.mxu0 0.0
        %443 = vmatpush.msra.mxu0 0.0
        %444 = vmatpush.msra.mxu0 0.0
        %445 = vmatpush.msra.mxu0 0.0
        %446 = vmatpush.msra.mxu0 0.0
        %447 = vmatpush.msra.mxu0 0.0
        %448 = vmatpush.msra.mxu0 0.0
        %449 = vmatpush.msra.mxu0 0.0
        %450 = vmatpush.msra.mxu0 0.0
        %451 = vmatpush.msra.mxu0 0.0
        %452 = vmatpush.msra.mxu0 0.0
        %453 = vmatpush.msra.mxu0 0.0
        %454 = vmatpush.msra.mxu0 %v399
        %455 = vmatpush.msra.mxu0 %v397
        %456 = vmatpush.msra.mxu0 %v395
        %457 = vmatpush.msra.mxu0 %v393
        %458 = vmatmul.f32.gmra.mxu0 %v419
        %v459 = vpop.f32.mrf.mxu0
        %v460 = vadd.f32 0.0, %v459
        %461 = vmatmul.f32.gmra.mxu0 %v422
        %v462 = vpop.f32.mrf.mxu0
        %v463 = vadd.f32 0.0, %v462
        %464 = vmatmul.f32.gmra.mxu0 %v425
        %v465 = vpop.f32.mrf.mxu0
        %v466 = vadd.f32 0.0, %v465
        %467 = vmatmul.f32.gmra.mxu0 %v428
        %v468 = vpop.f32.mrf.mxu0
        %v469 = vadd.f32 0.0, %v468
        %470 = vmatmul.f32.gmra.mxu0 %v431
        %v471 = vpop.f32.mrf.mxu0
        %v472 = vadd.f32 0.0, %v471
        %473 = vmatmul.f32.gmra.mxu0 %v434
        %v474 = vpop.f32.mrf.mxu0
        %v475 = vadd.f32 0.0, %v474
        %476 = vmatmul.f32.gmra.mxu0 %v437
        %v477 = vpop.f32.mrf.mxu0
        %v478 = vadd.f32 0.0, %v477
        %479 = vmatmul.f32.gmra.mxu0 %v440
        %v480 = vpop.f32.mrf.mxu0
        %v481 = vadd.f32 0.0, %v480
        %482 = vdwg.mxu0
        %483 = vmatpush.msra.mxu0 0.0
        %484 = vmatpush.msra.mxu0 0.0
        %485 = vmatpush.msra.mxu0 0.0
        %486 = vmatpush.msra.mxu0 0.0
        %487 = vmatpush.msra.mxu0 0.0
        %488 = vmatpush.msra.mxu0 0.0
        %489 = vmatpush.msra.mxu0 0.0
        %490 = vmatpush.msra.mxu0 0.0
        %491 = vmatpush.msra.mxu0 0.0
        %492 = vmatpush.msra.mxu0 0.0
        %493 = vmatpush.msra.mxu0 0.0
        %494 = vmatpush.msra.mxu0 0.0
        %495 = vmatpush.msra.mxu0 %v400
        %496 = vmatpush.msra.mxu0 %v398
        %497 = vmatpush.msra.mxu0 %v396
        %498 = vmatpush.msra.mxu0 %v394
        %499 = vmatmul.f32.gmra.mxu0 %v419
        %v500 = vpop.f32.mrf.mxu0
        %v501 = vadd.f32 0.0, %v500
        %502 = vmatmul.f32.gmra.mxu0 %v422
        %v503 = vpop.f32.mrf.mxu0
        %v504 = vadd.f32 0.0, %v503
        %505 = vmatmul.f32.gmra.mxu0 %v425
        %v506 = vpop.f32.mrf.mxu0
        %v507 = vadd.f32 0.0, %v506
        %508 = vmatmul.f32.gmra.mxu0 %v428
        %v509 = vpop.f32.mrf.mxu0
        %v510 = vadd.f32 0.0, %v509
        %511 = vmatmul.f32.gmra.mxu0 %v431
        %v512 = vpop.f32.mrf.mxu0
        %v513 = vadd.f32 0.0, %v512
        %514 = vmatmul.f32.gmra.mxu0 %v434
        %v515 = vpop.f32.mrf.mxu0
        %v516 = vadd.f32 0.0, %v515
        %517 = vmatmul.f32.gmra.mxu0 %v437
        %v518 = vpop.f32.mrf.mxu0
        %v519 = vadd.f32 0.0, %v518
        %520 = vmatmul.f32.gmra.mxu0 %v440
        %v521 = vpop.f32.mrf.mxu0
        %v522 = vadd.f32 0.0, %v521
        %523 = vdwg.mxu0
        %v525 = vsel %vm417, %v401, 0
        %v528 = vsel %vm417, %v402, 0
        %v531 = vsel %vm417, %v403, 0
        %v534 = vsel %vm417, %v404, 0
        %v537 = vsel %vm417, %v405, 0
        %v540 = vsel %vm417, %v406, 0
        %v543 = vsel %vm417, %v407, 0
        %v546 = vsel %vm417, %v408, 0
        %548 = vmatpush.msra.mxu0 0.0
        %549 = vmatpush.msra.mxu0 0.0
        %550 = vmatpush.msra.mxu0 0.0
        %551 = vmatpush.msra.mxu0 0.0
        %552 = vmatpush.msra.mxu0 0.0
        %553 = vmatpush.msra.mxu0 0.0
        %554 = vmatpush.msra.mxu0 0.0
        %555 = vmatpush.msra.mxu0 0.0
        %556 = vmatpush.msra.mxu0 0.0
        %557 = vmatpush.msra.mxu0 0.0
        %558 = vmatpush.msra.mxu0 0.0
        %559 = vmatpush.msra.mxu0 0.0
        %560 = vmatpush.msra.mxu0 %v391
        %561 = vmatpush.msra.mxu0 %v389
        %562 = vmatpush.msra.mxu0 %v387
        %563 = vmatpush.msra.mxu0 %v385
        %564 = vmatmul.f32.gmra.mxu0 %v525
        %v565 = vpop.f32.mrf.mxu0
        %v566 = vadd.f32 %v460, %v565
        %567 = vmatmul.f32.gmra.mxu0 %v528
        %v568 = vpop.f32.mrf.mxu0
        %v569 = vadd.f32 %v463, %v568
        %570 = vmatmul.f32.gmra.mxu0 %v531
        %v571 = vpop.f32.mrf.mxu0
        %v572 = vadd.f32 %v466, %v571
        %573 = vmatmul.f32.gmra.mxu0 %v534
        %v574 = vpop.f32.mrf.mxu0
        %v575 = vadd.f32 %v469, %v574
        %576 = vmatmul.f32.gmra.mxu0 %v537
        %v577 = vpop.f32.mrf.mxu0
        %v578 = vadd.f32 %v472, %v577
        %579 = vmatmul.f32.gmra.mxu0 %v540
        %v580 = vpop.f32.mrf.mxu0
        %v581 = vadd.f32 %v475, %v580
        %582 = vmatmul.f32.gmra.mxu0 %v543
        %v583 = vpop.f32.mrf.mxu0
        %v584 = vadd.f32 %v478, %v583
        %585 = vmatmul.f32.gmra.mxu0 %v546
        %v586 = vpop.f32.mrf.mxu0
        %v587 = vadd.f32 %v481, %v586
        %588 = vdwg.mxu0
        %589 = vmatpush.msra.mxu0 0.0
        %590 = vmatpush.msra.mxu0 0.0
        %591 = vmatpush.msra.mxu0 0.0
        %592 = vmatpush.msra.mxu0 0.0
        %593 = vmatpush.msra.mxu0 0.0
        %594 = vmatpush.msra.mxu0 0.0
        %595 = vmatpush.msra.mxu0 0.0
        %596 = vmatpush.msra.mxu0 0.0
        %597 = vmatpush.msra.mxu0 0.0
        %598 = vmatpush.msra.mxu0 0.0
        %599 = vmatpush.msra.mxu0 0.0
        %600 = vmatpush.msra.mxu0 0.0
        %601 = vmatpush.msra.mxu0 %v392
        %602 = vmatpush.msra.mxu0 %v390
        %603 = vmatpush.msra.mxu0 %v388
        %604 = vmatpush.msra.mxu0 %v386
        %605 = vmatmul.f32.gmra.mxu0 %v525
        %v606 = vpop.f32.mrf.mxu0
        %v607 = vadd.f32 %v501, %v606
        %608 = vmatmul.f32.gmra.mxu0 %v528
        %v609 = vpop.f32.mrf.mxu0
        %v610 = vadd.f32 %v504, %v609
        %611 = vmatmul.f32.gmra.mxu0 %v531
        %v612 = vpop.f32.mrf.mxu0
        %v613 = vadd.f32 %v507, %v612
        %614 = vmatmul.f32.gmra.mxu0 %v534
        %v615 = vpop.f32.mrf.mxu0
        %v616 = vadd.f32 %v510, %v615
        %617 = vmatmul.f32.gmra.mxu0 %v537
        %v618 = vpop.f32.mrf.mxu0
        %v619 = vadd.f32 %v513, %v618
        %620 = vmatmul.f32.gmra.mxu0 %v540
        %v621 = vpop.f32.mrf.mxu0
        %v622 = vadd.f32 %v516, %v621
        %623 = vmatmul.f32.gmra.mxu0 %v543
        %v624 = vpop.f32.mrf.mxu0
        %v625 = vadd.f32 %v519, %v624
        %626 = vmatmul.f32.gmra.mxu0 %v546
        %v627 = vpop.f32.mrf.mxu0
        %v628 = vadd.f32 %v522, %v627
        %629 = vdwg.mxu0
        %v630 = vld [vmem:[%s4] sm:$0xff]
        %v631 = vld [vmem:[%s4 + $0x8] sm:$0xff]
        %v632 = vld [vmem:[%s4 + $0x10] sm:$0xff]
        %v633 = vld [vmem:[%s4 + $0x18] sm:$0xff]
        %v634 = vld [vmem:[%s4 + $0x20] sm:$0xff]
        %v635 = vld [vmem:[%s4 + $0x28] sm:$0xff]
        %v636 = vld [vmem:[%s4 + $0x30] sm:$0xff]
        %v637 = vld [vmem:[%s4 + $0x38] sm:$0xff]
        %639 = vset.pattern.permute.xlu0 0
        %640 = vperm.xlu0 %639, %v630
        %v641 = vpop.permute.xlu0 %640
        %644 = vset.pattern.permute.xlu0 0
        %645 = vperm.xlu0 %644, %v631
        %v646 = vpop.permute.xlu0 %645
        %649 = vset.pattern.permute.xlu0 0
        %650 = vperm.xlu0 %649, %v632
        %v651 = vpop.permute.xlu0 %650
        %654 = vset.pattern.permute.xlu0 0
        %655 = vperm.xlu0 %654, %v633
        %v656 = vpop.permute.xlu0 %655
        %659 = vset.pattern.permute.xlu0 0
        %660 = vperm.xlu0 %659, %v634
        %v661 = vpop.permute.xlu0 %660
        %664 = vset.pattern.permute.xlu0 0
        %665 = vperm.xlu0 %664, %v635
        %v666 = vpop.permute.xlu0 %665
        %669 = vset.pattern.permute.xlu0 0
        %670 = vperm.xlu0 %669, %v636
        %v671 = vpop.permute.xlu0 %670
        %674 = vset.pattern.permute.xlu0 0
        %675 = vperm.xlu0 %674, %v637
        %v676 = vpop.permute.xlu0 %675
        %v678 = vadd.f32 %v566, %v641
        %v679 = vadd.f32 %v607, %v641
        %v680 = vadd.f32 %v569, %v646
        %v681 = vadd.f32 %v610, %v646
        %v682 = vadd.f32 %v572, %v651
        %v683 = vadd.f32 %v613, %v651
        %v684 = vadd.f32 %v575, %v656
        %v685 = vadd.f32 %v616, %v656
        %v686 = vadd.f32 %v578, %v661
        %v687 = vadd.f32 %v619, %v661
        %v688 = vadd.f32 %v581, %v666
        %v689 = vadd.f32 %v622, %v666
        %v690 = vadd.f32 %v584, %v671
        %v691 = vadd.f32 %v625, %v671
        %v692 = vadd.f32 %v587, %v676
        %v693 = vadd.f32 %v628, %v676
        %694 = vst [vmem:[%s364] sm:$0xff] %v678
        %695 = vst [vmem:[%s364 + $0x8] sm:$0xff] %v679
        %696 = vst [vmem:[%s364 + $0x10] sm:$0xff] %v680
        %697 = vst [vmem:[%s364 + $0x18] sm:$0xff] %v681
        %698 = vst [vmem:[%s364 + $0x20] sm:$0xff] %v682
        %699 = vst [vmem:[%s364 + $0x28] sm:$0xff] %v683
        %700 = vst [vmem:[%s364 + $0x30] sm:$0xff] %v684
        %701 = vst [vmem:[%s364 + $0x38] sm:$0xff] %v685
        %702 = vst [vmem:[%s364 + $0x40] sm:$0xff] %v686
        %703 = vst [vmem:[%s364 + $0x48] sm:$0xff] %v687
        %704 = vst [vmem:[%s364 + $0x50] sm:$0xff] %v688
        %705 = vst [vmem:[%s364 + $0x58] sm:$0xff] %v689
        %706 = vst [vmem:[%s364 + $0x60] sm:$0xff] %v690
        %707 = vst [vmem:[%s364 + $0x68] sm:$0xff] %v691
        %708 = vst [vmem:[%s364 + $0x70] sm:$0xff] %v692
        %709 = vst [vmem:[%s364 + $0x78] sm:$0xff] %v693
        %v710 = vmax.f32 %v678, 0.0
        %v711 = vmax.f32 %v679, 0.0
        %v712 = vmax.f32 %v680, 0.0
        %v713 = vmax.f32 %v681, 0.0
        %v714 = vmax.f32 %v682, 0.0
        %v715 = vmax.f32 %v683, 0.0
        %v716 = vmax.f32 %v684, 0.0
        %v717 = vmax.f32 %v685, 0.0
        %v718 = vmax.f32 %v686, 0.0
        %v719 = vmax.f32 %v687, 0.0
        %v720 = vmax.f32 %v688, 0.0
        %v721 = vmax.f32 %v689, 0.0
        %v722 = vmax.f32 %v690, 0.0
        %v723 = vmax.f32 %v691, 0.0
        %v724 = vmax.f32 %v692, 0.0
        %v725 = vmax.f32 %v693, 0.0
        %726 = vst [vmem:[%s357] sm:$0xff] %v710
        %727 = vst [vmem:[%s357 + $0x8] sm:$0xff] %v711
        %728 = vst [vmem:[%s357 + $0x10] sm:$0xff] %v712
        %729 = vst [vmem:[%s357 + $0x18] sm:$0xff] %v713
        %730 = vst [vmem:[%s357 + $0x20] sm:$0xff] %v714
        %731 = vst [vmem:[%s357 + $0x28] sm:$0xff] %v715
        %732 = vst [vmem:[%s357 + $0x30] sm:$0xff] %v716
        %733 = vst [vmem:[%s357 + $0x38] sm:$0xff] %v717
        %734 = vst [vmem:[%s357 + $0x40] sm:$0xff] %v718
        %735 = vst [vmem:[%s357 + $0x48] sm:$0xff] %v719
        %736 = vst [vmem:[%s357 + $0x50] sm:$0xff] %v720
        %737 = vst [vmem:[%s357 + $0x58] sm:$0xff] %v721
        %738 = vst [vmem:[%s357 + $0x60] sm:$0xff] %v722
        %739 = vst [vmem:[%s357 + $0x68] sm:$0xff] %v723
        %740 = vst [vmem:[%s357 + $0x70] sm:$0xff] %v724
        %741 = vst [vmem:[%s357 + $0x78] sm:$0xff] %v725
        %s742 = sand.u32 %s171, 1
        %s743 = scalar_lea.sflag [#allocation4], %s742
        %s744 = sand.u32 %s171, 1
        %s745 = smul.addr %s744, 128
        %s746 = scalar_lea.vmem [#allocation7], %s745
        %s747 = sand.u32 %s199, 1
        %s748 = scalar_lea.sflag [#allocation9], %s747
        %s749 = sand.u32 %s199, 1
        %s750 = smul.addr %s749, 128
        %s751 = scalar_lea.vmem [#allocation8], %s750
        // Predicated region
        $region49: #{tpu_custom_call.1} parent=39 // pred_check
          %p752 = pneg %p181
        $region50: #{tpu_custom_call.1} parent=39 // pred_check_branch
          %754 = sbr.rel (%p752) target = $region52
        $region51: #{tpu_custom_call.1} parent=39 // pred_region
          %s755 = smul.u32 2, %s35
          %s756 = ssub.s32 3, %s755
          %p757 = scmp.lt.s32.totalorder %s756, 2
          %s758 = scalar_select %p757, %s756, 2
          %s759 = smul.u32 64, %s758
          %s760 = ssub.s32 128, %s759
          %s761 = sshll.u32 %s760, 4
          %762 = vsyncadd %s743, %s761
          %p763 = scmp.ne.s32.totalorder 0, %s759
          %s764 = smul.addr %s34, 24
          %s765 = sadd.s32 %s755, %s764
          %s766 = smul.addr %s765, 8
          %s767 = scalar_lea.hbm %s5, %s766
          %s768 = smul.u32 %s758, 8
          %s769 = smul.u32 %s768, 8
          %s770 = sshll.u32 %s746, 4
          %s771 = int_to_ptr.vmem [resolvable:$true] %s770
          %s772 = sshll.u32 %s767, 4
          %s773 = int_to_ptr.hbm [resolvable:$true] %s772
          %s774 = sshll.u32 %s769, 4
          %778 = dma.vmem_to_hbm [thread:$0]  (%p763), %s771, %s774, %s773, %s743, 256, 384, %s768
        $region52: #{tpu_custom_call.1} parent=39 // pred_fallthru
          _
        // Predicated region
        $region53: #{tpu_custom_call.1} parent=39 // pred_check
          %p779 = pneg %p209
        $region54: #{tpu_custom_call.1} parent=39 // pred_check_branch
          %781 = sbr.rel (%p779) target = $region56
        $region55: #{tpu_custom_call.1} parent=39 // pred_region
          %s782 = smul.u32 2, %s35
          %s783 = ssub.s32 3, %s782
          %p784 = scmp.lt.s32.totalorder %s783, 2
          %s785 = scalar_select %p784, %s783, 2
          %s786 = smul.u32 64, %s785
          %s787 = ssub.s32 128, %s786
          %s788 = sshll.u32 %s787, 4
          %789 = vsyncadd %s748, %s788
          %p790 = scmp.ne.s32.totalorder 0, %s786
          %s791 = smul.addr %s34, 24
          %s792 = sadd.s32 %s782, %s791
          %s793 = smul.addr %s792, 8
          %s794 = scalar_lea.hbm %s6, %s793
          %s795 = smul.u32 %s785, 8
          %s796 = smul.u32 %s795, 8
          %s797 = sshll.u32 %s751, 4
          %s798 = int_to_ptr.vmem [resolvable:$true] %s797
          %s799 = sshll.u32 %s794, 4
          %s800 = int_to_ptr.hbm [resolvable:$true] %s799
          %s801 = sshll.u32 %s796, 4
          %805 = dma.vmem_to_hbm [thread:$0]  (%p790), %s798, %s801, %s800, %s748, 256, 384, %s795
        $region56: #{tpu_custom_call.1} parent=39 // pred_fallthru
          _
      $region40: #{tpu_custom_call.1} parent=5 // pred_fallthru
        _
      %p806 = scmp.le.s32.totalorder 2, %s25
      // Predicated region
      $region57: #{tpu_custom_call.1} parent=5 // pred_check
        %p807 = pneg %p806
      $region58: #{tpu_custom_call.1} parent=5 // pred_check_branch
        %809 = sbr.rel (%p807) target = $region60
      $region59: #{tpu_custom_call.1} parent=5 // pred_region
        %s810 = ssub.s32 %s25, 2
        // Predicated region
        $region61: #{tpu_custom_call.1} parent=59 // pred_check
          %p811 = pneg %p187
        $region62: #{tpu_custom_call.1} parent=59 // pred_check_branch
          %813 = sbr.rel (%p811) target = $region64
        $region63: #{tpu_custom_call.1} parent=59 // pred_region
          %s814 = sand.u32 %s172, 1
          %s815 = scalar_lea.sflag [#allocation4], %s814
          %s816 = sand.u32 %s172, 1
          %s817 = smul.addr %s816, 128
          %s818 = scalar_lea.vmem [#allocation7], %s817
          %820 = dma.done %s815, 2048
        $region64: #{tpu_custom_call.1} parent=59 // pred_fallthru
          _
        // Predicated region
        $region65: #{tpu_custom_call.1} parent=59 // pred_check
          %p821 = pneg %p215
        $region66: #{tpu_custom_call.1} parent=59 // pred_check_branch
          %823 = sbr.rel (%p821) target = $region68
        $region67: #{tpu_custom_call.1} parent=59 // pred_region
          %s824 = sand.u32 %s200, 1
          %s825 = scalar_lea.sflag [#allocation9], %s824
          %s826 = sand.u32 %s200, 1
          %s827 = smul.addr %s826, 128
          %s828 = scalar_lea.vmem [#allocation8], %s827
          %830 = dma.done %s825, 2048
        $region68: #{tpu_custom_call.1} parent=59 // pred_fallthru
          _
      $region60: #{tpu_custom_call.1} parent=5 // pred_fallthru
        _
    $region6: #{tpu_custom_call.1} parent=1 // loop_footer
      %s29 = sadd.s32 1, %s25
    $region7: #{tpu_custom_call.1} parent=1 // loop_footer_branch
      %24 = sbr.rel target = $region3
    $region8: #{tpu_custom_call.1} parent=1 // loop_exit
      _
    %831 = vsyncpa [#allocation3], 1
    %s832 = scalar_lea.sflag [#allocation3], 1
    %833 = vsyncpa %s832, 1
    %834 = vsyncpa [#allocation6], 1
    %s835 = scalar_lea.sflag [#allocation6], 1
    %836 = vsyncpa %s835, 1
    %837 = vsyncpa [#allocation4], 1
    %s838 = scalar_lea.sflag [#allocation4], 1
    %839 = vsyncpa %s838, 1
    %840 = vsyncpa [#allocation9], 1
    %s841 = scalar_lea.sflag [#allocation9], 1
    %842 = vsyncpa %s841, 1

</llo_original>
